<compile_context>
chip_gen: v5e
topology: v5e:2x2
jax: 0.10.0
libtpu: 0.0.40
codegen_flags: <defaults>
</compile_context>

<pallas_src>
import jax
import jax.numpy as jnp
from jax.experimental import pallas as pl
from jax.experimental.pallas import tpu as pltpu


def _im2col(x, kernel_size, stride, padding, dilation):
    """torch.nn.functional.unfold equivalent. x: (N, C, H, W) -> (N, K, L).

    K = C*kh*kw in torch's (channel, kh, kw) ordering, L = Hout*Wout row-major.
    No transpose: L stays on the last (lane) axis.
    """
    N, C, H, W = x.shape
    kh, kw = kernel_size
    sh, sw = stride
    ph, pw = padding
    dh, dw = dilation
    Hout = (H + 2 * ph - dh * (kh - 1) - 1) // sh + 1
    Wout = (W + 2 * pw - dw * (kw - 1) - 1) // sw + 1
    xp = jnp.pad(x, ((0, 0), (0, 0), (ph, ph), (pw, pw)))
    cols = []
    for i in range(kh):
        for j in range(kw):
            patch = xp[:, :,
                       i * dh: i * dh + sh * Hout: sh,
                       j * dw: j * dw + sw * Wout: sw]  # (N, C, Hout, Wout)
            cols.append(patch)
    col = jnp.stack(cols, axis=2).reshape(N, C * kh * kw, Hout * Wout)
    return col, Hout, Wout


def _matmul_bias_kernel(w_ref, b_ref, p_ref, o_ref, acc_ref):
    # w_ref: (TCout, TK), b_ref: (TCout, 1) f32, p_ref: (TK, TL)
    # o_ref: (TCout, TL), acc_ref: (TCout, TL) f32 scratch (resident over K axis)
    k = pl.program_id(3)

    @pl.when(k == 0)
    def _():
        acc_ref[...] = jnp.zeros_like(acc_ref)

    acc_ref[...] += jnp.dot(w_ref[...], p_ref[...],
                            preferred_element_type=jnp.float32)

    @pl.when(k == pl.num_programs(3) - 1)
    def _():
        o_ref[...] = (acc_ref[...] + b_ref[...]).astype(o_ref.dtype)


def _vmem_budget_bytes():
    """Generation-aware VMEM budget: ~half of physical VMEM (v5e/v6e: 128 MiB
    physical -> 64 MiB budget; v7x: 64 MiB -> 32 MiB)."""
    try:
        phys = int(pltpu.get_tpu_info().vmem_capacity_bytes)
    except Exception:
        phys = 64 << 20  # conservative fallback (v7x per-core VMEM)
    return max(min(phys // 2, 96 << 20), 8 << 20)


def _pick_tiles(K, cout_pad, L, patch_isz, w_isz, out_isz, budget):
    """Pick (TCout, TK, TL) so the double-buffered working set fits `budget`."""
    tcout = min(cout_pad, 256)          # matches 256-wide MXU on v6e/v7x

    # K tile: only tile K when it is large AND a clean multiple-of-128 divisor
    # exists (avoids garbage in ragged K blocks polluting the accumulation).
    if K > 2048:
        tk = next((d for d in range(2048, 127, -128) if K % d == 0), K)
    else:
        tk = K

    def fixed_bytes(tc):
        # Weight counted double-buffered (its block changes along the K axis);
        # bias counted double-buffered with lane padding. Conservative.
        return 2 * tc * tk * w_isz + 2 * tc * 128 * 4

    def per_tl_bytes(tc):
        # 2x patch buffers (compute dtype) + 2x output buffers (output dtype)
        # + 1x f32 accumulator scratch.
        return 2 * tk * patch_isz + 2 * tc * out_isz + tc * 4

    while tcout > 8 and fixed_bytes(tcout) > budget // 2:
        tcout = max(8, tcout // 2)

    avail = max(budget - fixed_bytes(tcout), 128 * per_tl_bytes(tcout))
    max_tl = avail // per_tl_bytes(tcout)
    if max_tl >= L:
        tl = L                           # single lane tile covering all of L
    else:
        tl = max(128, min(2048, (max_tl // 128) * 128))
    need = fixed_bytes(tcout) + per_tl_bytes(tcout) * tl
    return int(tcout), int(tk), int(tl), int(need)


def im2col_conv2d(x, weight, bias, kernel_size, stride=(1, 1),
                  padding=(0, 0), dilation=(1, 1),
                  compute_dtype=jnp.bfloat16):
    """
    x:      (N, C_in, H, W)        NCHW
    weight: (C_out, C_in*kh*kw)    flattened conv weight (torch ordering)
    bias:   (C_out,) or None
    compute_dtype: MXU input dtype (default bf16); accumulation is float32.
    returns (N, C_out, H_out, W_out) in x's original dtype.
    """
    N, C, H, W = x.shape
    Cout, K = weight.shape
    out_dtype = x.dtype
    if bias is None:
        bias = jnp.zeros((Cout,), jnp.float32)

    # Cast BEFORE the unfold so the big (N, K, L) slab is materialized in the
    # compute dtype (half the HBM bytes vs casting after).
    if compute_dtype is not None:
        x = x.astype(compute_dtype)
        weight = weight.astype(compute_dtype)

    patches, Hout, Wout = _im2col(x, kernel_size, stride, padding, dilation)  # (N, K, L)
    L = Hout * Wout

    # Pad Cout to a sublane multiple (unmasked output stores); slice afterwards.
    cout_pad = max(8, ((Cout + 7) // 8) * 8)
    if cout_pad != Cout:
        weight = jnp.pad(weight, ((0, cout_pad - Cout), (0, 0)))
        bias = jnp.pad(bias, ((0, cout_pad - Cout),))
    b2 = bias.reshape(cout_pad, 1).astype(jnp.float32)

    patch_isz = jnp.dtype(patches.dtype).itemsize
    w_isz = jnp.dtype(weight.dtype).itemsize
    out_isz = jnp.dtype(out_dtype).itemsize

    budget = _vmem_budget_bytes()
    tcout, tk, tl, need = _pick_tiles(K, cout_pad, L, patch_isz, w_isz,
                                      out_isz, budget)

    n_cout = pl.cdiv(cout_pad, tcout)
    n_l = pl.cdiv(L, tl)
    n_k = pl.cdiv(K, tk)

    # v7x has 2 TensorCores: make sure there are >=2 points on a parallel axis.
    if N * n_cout * n_l < 2 and L > 128:
        tl = min(tl, ((pl.cdiv(L, 2) + 127) // 128) * 128)
        n_l = pl.cdiv(L, tl)

    vmem_limit = int(need * 1.25) + (4 << 20)  # ~25% headroom + compiler scratch

    cost = pl.CostEstimate(
        flops=2 * N * cout_pad * K * L,
        transcendentals=0,
        bytes_accessed=(N * K * L * patch_isz
                        + cout_pad * K * w_isz
                        + cout_pad * 4
                        + N * cout_pad * L * out_isz),
    )

    out_unf = pl.pallas_call(
        _matmul_bias_kernel,
        out_shape=jax.ShapeDtypeStruct((N, cout_pad, L), out_dtype),
        grid_spec=pltpu.PrefetchScalarGridSpec(
            num_scalar_prefetch=0,
            grid=(N, n_cout, n_l, n_k),
            in_specs=[
                pl.BlockSpec((tcout, tk), lambda b, co, l, k: (co, k)),      # weight
                pl.BlockSpec((tcout, 1), lambda b, co, l, k: (co, 0)),       # bias
                pl.BlockSpec((None, tk, tl), lambda b, co, l, k: (b, k, l)),  # patches
            ],
            out_specs=pl.BlockSpec((None, tcout, tl),
                                   lambda b, co, l, k: (b, co, l)),
            scratch_shapes=[pltpu.VMEM((tcout, tl), jnp.float32)],
        ),
        compiler_params=pltpu.CompilerParams(
            dimension_semantics=("parallel", "parallel", "parallel", "arbitrary"),
            vmem_limit_bytes=vmem_limit),
        cost_estimate=cost,
    )(weight, b2, patches)                      # (N, cout_pad, L)

    # Drop Cout padding and reshape straight to NCHW (no transpose needed).
    out = out_unf[:, :Cout, :].reshape(N, Cout, Hout, Wout)
    return out


if __name__ == "__main__":
    key = jax.random.PRNGKey(0)
    k_x, k_w, k_b = jax.random.split(key, 3)

    N, Cin, H, W = 2, 4, 16, 16
    Cout = 8
    kernel_size = (3, 3)
    stride = (1, 1)
    padding = (1, 1)
    dilation = (1, 1)
    K = Cin * kernel_size[0] * kernel_size[1]

    x = jax.random.normal(k_x, (N, Cin, H, W), dtype=jnp.float32)
    # conv weight flattened exactly as Im2ColConv2d.fromTorch does:
    # (Cout, Cin, kh, kw) -> (Cout, Cin*kh*kw)
    w4 = jax.random.normal(k_w, (Cout, Cin, kernel_size[0], kernel_size[1]),
                           dtype=jnp.float32) * 0.1
    weight = w4.reshape(Cout, K)
    bias = jax.random.normal(k_b, (Cout,), dtype=jnp.float32) * 0.1

    out = im2col_conv2d(x, weight, bias, kernel_size, stride, padding, dilation)
    out = jax.block_until_ready(out)

    # Reference: same bf16 quantization of inputs/weights, f32 accumulation,
    # via XLA's conv (same semantics as torch.nn.Conv2d).
    xq = x.astype(jnp.bfloat16).astype(jnp.float32)
    wq = w4.astype(jnp.bfloat16).astype(jnp.float32)
    ref = jax.lax.conv_general_dilated(
        xq, wq, window_strides=stride, padding=[padding, padding],
        rhs_dilation=dilation,
        dimension_numbers=("NCHW", "OIHW", "NCHW"),
    ) + bias.reshape(1, Cout, 1, 1)

    assert out.shape == ref.shape, (out.shape, ref.shape)
    assert jnp.allclose(out, ref, atol=2e-3, rtol=2e-3), "mismatch vs reference conv"

    print("KERNEL_OK")
</pallas_src>

<mosaic_0001>
module attributes {stable_mosaic.version = 11 : i64} {
  func.func @_matmul_bias_kernel(%arg0: i32, %arg1: i32, %arg2: i32, %arg3: i32, %arg4: memref<8x36xbf16, #tpu.memory_space<vmem>>, %arg5: memref<8x1xf32, #tpu.memory_space<vmem>>, %arg6: memref<1x36x256xbf16, #tpu.memory_space<vmem>>, %arg7: memref<1x8x256xf32, #tpu.memory_space<vmem>>, %arg8: memref<8x256xf32, #tpu.memory_space<vmem>>) attributes {dimension_semantics = [#tpu.dimension_semantics<parallel>, #tpu.dimension_semantics<parallel>, #tpu.dimension_semantics<parallel>, #tpu.dimension_semantics<arbitrary>], iteration_bounds = array<i64: 2, 1, 1, 1>, scalar_prefetch = 0 : i64, scratch_operands = 1 : i64, tpu.core_type = #tpu.core_type<tc>, window_params = [{transform_indices = @transform_0, window_bounds = array<i64: 8, 36>}, {transform_indices = @transform_1, window_bounds = array<i64: 8, 1>}, {transform_indices = @transform_2, window_bounds = array<i64: 1, 36, 256>}, {transform_indices = @transform_3, window_bounds = array<i64: 1, 8, 256>}]} {
    %c0_i32 = arith.constant 0 : i32
    %0 = arith.cmpi eq, %arg3, %c0_i32 : i32
    %1 = arith.extui %0 : i1 to i32
    %c0_i32_0 = arith.constant 0 : i32
    %2 = arith.cmpi ne, %1, %c0_i32_0 : i32
    scf.if %2 {
      %cst_11 = arith.constant 0.000000e+00 : f32
      %13 = vector.broadcast %cst_11 : f32 to vector<8x256xf32>
      %c0_12 = arith.constant 0 : index
      %c0_13 = arith.constant 0 : index
      %14 = vector.load %arg8[%c0_12, %c0_13] : memref<8x256xf32, #tpu.memory_space<vmem>>, vector<8x256xf32>
      tpu.vector_store %arg8[%c0_12, %c0_13], %13 {strides = array<i32>} : memref<8x256xf32, #tpu.memory_space<vmem>>, vector<8x256xf32>,
    } else {
    }
    %c0 = arith.constant 0 : index
    %c0_1 = arith.constant 0 : index
    %3 = vector.load %arg8[%c0, %c0_1] : memref<8x256xf32, #tpu.memory_space<vmem>>, vector<8x256xf32>
    %c0_2 = arith.constant 0 : index
    %c0_3 = arith.constant 0 : index
    %4 = vector.load %arg4[%c0_2, %c0_3] : memref<8x36xbf16, #tpu.memory_space<vmem>>, vector<8x36xbf16>
    %c0_4 = arith.constant 0 : index
    %c0_5 = arith.constant 0 : index
    %c0_6 = arith.constant 0 : index
    %5 = vector.load %arg6[%c0_4, %c0_5, %c0_6] : memref<1x36x256xbf16, #tpu.memory_space<vmem>>, vector<1x36x256xbf16>
    %6 = vector.shape_cast %5 : vector<1x36x256xbf16> to vector<36x256xbf16>
    %cst = arith.constant dense<0.000000e+00> : vector<8x256xf32>
    %7 = tpu.matmul %4, %6, %cst {dimension_numbers = #tpu.dot_dimension_numbers<[1], [0], [0], [1], [0, 0, 1, 1], [], []>} : vector<8x36xbf16>, vector<36x256xbf16>, vector<8x256xf32> -> vector<8x256xf32>
    %8 = arith.addf %3, %7 : vector<8x256xf32>
    %c0_7 = arith.constant 0 : index
    %c0_8 = arith.constant 0 : index
    %9 = vector.load %arg8[%c0_7, %c0_8] : memref<8x256xf32, #tpu.memory_space<vmem>>, vector<8x256xf32>
    tpu.vector_store %arg8[%c0_7, %c0_8], %8 {strides = array<i32>} : memref<8x256xf32, #tpu.memory_space<vmem>>, vector<8x256xf32>,
    %c0_i32_9 = arith.constant 0 : i32
    %10 = arith.cmpi eq, %arg3, %c0_i32_9 : i32
    %11 = arith.extui %10 : i1 to i32
    %c0_i32_10 = arith.constant 0 : i32
    %12 = arith.cmpi ne, %11, %c0_i32_10 : i32
    scf.if %12 {
      %c0_11 = arith.constant 0 : index
      %c0_12 = arith.constant 0 : index
      %13 = vector.load %arg8[%c0_11, %c0_12] : memref<8x256xf32, #tpu.memory_space<vmem>>, vector<8x256xf32>
      %c0_13 = arith.constant 0 : index
      %c0_14 = arith.constant 0 : index
      %14 = vector.load %arg5[%c0_13, %c0_14] : memref<8x1xf32, #tpu.memory_space<vmem>>, vector<8x1xf32>
      %15 = vector.broadcast %14 : vector<8x1xf32> to vector<8x256xf32>
      %16 = arith.addf %13, %15 : vector<8x256xf32>
      %c0_15 = arith.constant 0 : index
      %c0_16 = arith.constant 0 : index
      %c0_17 = arith.constant 0 : index
      %17 = vector.load %arg7[%c0_15, %c0_16, %c0_17] : memref<1x8x256xf32, #tpu.memory_space<vmem>>, vector<1x8x256xf32>
      %18 = vector.shape_cast %17 : vector<1x8x256xf32> to vector<8x256xf32>
      %19 = vector.shape_cast %16 : vector<8x256xf32> to vector<1x8x256xf32>
      tpu.vector_store %arg7[%c0_15, %c0_16, %c0_17], %19 {strides = array<i32>} : memref<1x8x256xf32, #tpu.memory_space<vmem>>, vector<1x8x256xf32>,
    } else {
    }
    return
  }
  func.func @transform_0(%arg0: i32, %arg1: i32, %arg2: i32, %arg3: i32) -> (i32, i32) {
    %c0_i32 = arith.constant 0 : i32
    return %arg1, %arg3 : i32, i32
  }
  func.func @transform_1(%arg0: i32, %arg1: i32, %arg2: i32, %arg3: i32) -> (i32, i32) {
    %c0_i32 = arith.constant 0 : i32
    %c0_i32_0 = arith.constant 0 : i32
    return %arg1, %c0_i32 : i32, i32
  }
  func.func @transform_2(%arg0: i32, %arg1: i32, %arg2: i32, %arg3: i32) -> (i32, i32, i32) {
    %c0_i32 = arith.constant 0 : i32
    return %arg0, %arg3, %arg2 : i32, i32, i32
  }
  func.func @transform_3(%arg0: i32, %arg1: i32, %arg2: i32, %arg3: i32) -> (i32, i32, i32) {
    %c0_i32 = arith.constant 0 : i32
    return %arg0, %arg1, %arg2 : i32, i32, i32
  }
}

</mosaic_0001>

<llo_original>
// kernel: tpu_custom_call.1
$region0: #{tpu_custom_call.1}
  #allocation0 [shape = 'u32[]', space=smem, size = 0x4, offset = 0x4, fixed_abs, tag = 'smem constant byte address 0x4 - core index']
  #allocation1 [shape = 'u32[72,128]{1,0:T(1,128)}', space=vmem, size = 0x9000, scoped, tag = 'internal scratch']
  #allocation2 [shape = 'f32[8,256]{1,0:T(8,128)}', space=vmem, size = 0x2000, scoped, tag = 'scratch operand']
  %s0 = inlined_call_operand.vmem [shape: bf16[8,36], index: 0, kind: input, shape index: {}]
  %s1 = inlined_call_operand.vmem [shape: f32[8,1], index: 1, kind: input, shape index: {}]
  %s2 = inlined_call_operand.vmem [shape: bf16[2,36,256], index: 2, kind: input, shape index: {}]
  %s3 = inlined_call_operand.hbm [shape: f32[2,8,256], index: 3, kind: output, shape index: {}]
  %s4 = sld [smem:[#allocation0]]
  $region53: #{tpu_custom_call.1} parent=0
    _
  %s6 = ssub.s32 1, %s4
  %s7 = scalar_select 0, %s6, %s4
  $region1: #{tpu_custom_call.1} parent=0
    #allocation3 [shape = 'u8[16384]{0}', space=vmem, size = 0x4000, scoped, tag = 'output window, operand 0']
    #allocation4 [shape = 's32[2]{0}', space=sflag, size = 0x8, scoped, tag = 'scoped memory for tpu_custom_call.1']
    %8 = vsyncpa [#allocation4], 0
    %s9 = scalar_lea.sflag [#allocation4], 1
    %10 = vsyncpa %s9, 0
    loop: start=0, step=1, limit=4
    $region2: #{tpu_custom_call.1} parent=1 // loop_pre_header
      _
    $region3: #{tpu_custom_call.1} parent=1 // loop_header
      %s12 = sphi 0, %s16
      %p13 = scmp.ge.s32.totalorder %s12, 4
      %s19 = sphi 0, %s45
      %s20 = sphi 0, %s41
      %s21 = sphi 0, %s37
      %s22 = sphi 0, %s33
      %s23 = sphi 0, %s19
      %s24 = sphi 0, %s20
      %s25 = sphi 0, %s21
      %s26 = sphi 0, %s22
      %s27 = sphi 0, %s23
      %s28 = sphi 0, %s24
      %s29 = sphi 0, %s25
      %s30 = sphi 0, %s26
      %s50 = sphi 0, %s52
      %s53 = sphi 0, %s50
      %s54 = sphi 0, %s53
      %s70 = sphi 0, %s54
      %s76 = sphi 0, %s78
      %s79 = sphi 0, %s76
      %s80 = sphi 0, %s79
      %s96 = sphi 0, %s80
      %s106 = sphi 0, %s108
      %s109 = sphi 0, %s106
      %s110 = sphi 0, %s109
      %s126 = sphi 0, %s110
      %s136 = sphi 0, %s138
      %s139 = sphi 0, %s136
      %s140 = sphi 0, %s139
      %s156 = sphi 0, %s140
    $region4: #{tpu_custom_call.1} parent=1 // loop_header_branch
      %15 = sbr.rel (%p13) target = $region8
    $region5: #{tpu_custom_call.1} parent=1 // loop_body
      %s17 = ssub.s32 %s12, 1
      %s18 = ssub.s32 %s12, 2
      %s31 = sadd.s32 1, %s22
      %p32 = scmp.ge.s32.totalorder %s31, 1
      %s33 = scalar_select %p32, 0, %s31
      %s34 = sadd.s32 1, %s21
      %s35 = scalar_select %p32, %s34, %s21
      %p36 = scmp.ge.s32.totalorder %s35, 1
      %s37 = scalar_select %p36, 0, %s35
      %s38 = sadd.s32 1, %s20
      %s39 = scalar_select %p36, %s38, %s20
      %p40 = scmp.ge.s32.totalorder %s39, 1
      %s41 = scalar_select %p40, 0, %s39
      %s42 = sadd.s32 1, %s19
      %s43 = scalar_select %p40, %s42, %s19
      %p44 = scmp.ge.s32.totalorder %s43, 2
      %s45 = scalar_select %p44, 0, %s43
      %s46 = ssub.s32 %s20, %s41
      %s47 = ssub.s32 %s22, %s33
      %s48 = sor.u32 %s46, %s47
      %p49 = scmp.eq.s32.totalorder %s48, 0
      %s51 = sadd.s32 %s50, 1
      %s52 = scalar_select %p49, %s50, %s51
      %p55 = pneg %p49
      %p56 = scmp.eq.s32.totalorder %s12, 1
      %p57 = por %p55, %p56
      %p58 = scmp.ne.s32.totalorder %s50, %s53
      %p59 = scmp.eq.s32.totalorder %s12, 0
      %p60 = por %p58, %p59
      %p61 = scmp.ne.s32.totalorder %s50, %s53
      %p62 = scmp.eq.s32.totalorder %s17, 1
      %p63 = por %p61, %p62
      %p64 = scmp.ne.s32.totalorder %s53, %s54
      %p65 = scmp.eq.s32.totalorder %s17, 0
      %p66 = por %p64, %p65
      %p67 = scmp.ne.s32.totalorder %s53, %s54
      %p68 = scmp.eq.s32.totalorder %s18, 1
      %p69 = por %p67, %p68
      %p71 = scmp.ne.s32.totalorder %s54, %s70
      %p72 = scmp.eq.s32.totalorder %s18, 0
      %p73 = por %p71, %p72
      %s74 = ssub.s32 %s20, %s41
      %p75 = scmp.eq.s32.totalorder %s74, 0
      %s77 = sadd.s32 %s76, 1
      %s78 = scalar_select %p75, %s76, %s77
      %p81 = pneg %p75
      %p82 = scmp.eq.s32.totalorder %s12, 1
      %p83 = por %p81, %p82
      %p84 = scmp.ne.s32.totalorder %s76, %s79
      %p85 = scmp.eq.s32.totalorder %s12, 0
      %p86 = por %p84, %p85
      %p87 = scmp.ne.s32.totalorder %s76, %s79
      %p88 = scmp.eq.s32.totalorder %s17, 1
      %p89 = por %p87, %p88
      %p90 = scmp.ne.s32.totalorder %s79, %s80
      %p91 = scmp.eq.s32.totalorder %s17, 0
      %p92 = por %p90, %p91
      %p93 = scmp.ne.s32.totalorder %s79, %s80
      %p94 = scmp.eq.s32.totalorder %s18, 1
      %p95 = por %p93, %p94
      %p97 = scmp.ne.s32.totalorder %s80, %s96
      %p98 = scmp.eq.s32.totalorder %s18, 0
      %p99 = por %p97, %p98
      %s100 = ssub.s32 %s19, %s45
      %s101 = ssub.s32 %s22, %s33
      %s102 = sor.u32 %s100, %s101
      %s103 = ssub.s32 %s21, %s37
      %s104 = sor.u32 %s102, %s103
      %p105 = scmp.eq.s32.totalorder %s104, 0
      %s107 = sadd.s32 %s106, 1
      %s108 = scalar_select %p105, %s106, %s107
      %p111 = pneg %p105
      %p112 = scmp.eq.s32.totalorder %s12, 1
      %p113 = por %p111, %p112
      %p114 = scmp.ne.s32.totalorder %s106, %s109
      %p115 = scmp.eq.s32.totalorder %s12, 0
      %p116 = por %p114, %p115
      %p117 = scmp.ne.s32.totalorder %s106, %s109
      %p118 = scmp.eq.s32.totalorder %s17, 1
      %p119 = por %p117, %p118
      %p120 = scmp.ne.s32.totalorder %s109, %s110
      %p121 = scmp.eq.s32.totalorder %s17, 0
      %p122 = por %p120, %p121
      %p123 = scmp.ne.s32.totalorder %s109, %s110
      %p124 = scmp.eq.s32.totalorder %s18, 1
      %p125 = por %p123, %p124
      %p127 = scmp.ne.s32.totalorder %s110, %s126
      %p128 = scmp.eq.s32.totalorder %s18, 0
      %p129 = por %p127, %p128
      %s130 = ssub.s32 %s19, %s45
      %s131 = ssub.s32 %s20, %s41
      %s132 = sor.u32 %s130, %s131
      %s133 = ssub.s32 %s21, %s37
      %s134 = sor.u32 %s132, %s133
      %p135 = scmp.eq.s32.totalorder %s134, 0
      %s137 = sadd.s32 %s136, 1
      %s138 = scalar_select %p135, %s136, %s137
      %p141 = pneg %p135
      %p142 = scmp.eq.s32.totalorder %s12, 1
      %p143 = por %p141, %p142
      %p144 = scmp.ne.s32.totalorder %s136, %s139
      %p145 = scmp.eq.s32.totalorder %s12, 0
      %p146 = por %p144, %p145
      %p147 = scmp.ne.s32.totalorder %s136, %s139
      %p148 = scmp.eq.s32.totalorder %s17, 1
      %p149 = por %p147, %p148
      %p150 = scmp.ne.s32.totalorder %s139, %s140
      %p151 = scmp.eq.s32.totalorder %s17, 0
      %p152 = por %p150, %p151
      %p153 = scmp.ne.s32.totalorder %s139, %s140
      %p154 = scmp.eq.s32.totalorder %s18, 1
      %p155 = por %p153, %p154
      %p157 = scmp.ne.s32.totalorder %s140, %s156
      %p158 = scmp.eq.s32.totalorder %s18, 0
      %p159 = por %p157, %p158
      %p160 = scmp.le.s32.totalorder 1, %s12
      %p161 = scmp.lt.s32.totalorder %s12, 3
      %p162 = pnand %p160, %p161
      %p163 = pneg %p162
      // Predicated region
      $region9: #{tpu_custom_call.1} parent=5 // pred_check
        _
      $region10: #{tpu_custom_call.1} parent=5 // pred_check_branch
        %165 = sbr.rel (%p162) target = $region12
      $region11: #{tpu_custom_call.1} parent=5 // pred_region
        %s166 = ssub.s32 %s12, 1
        // Predicated region
        $region13: #{tpu_custom_call.1} parent=11 // pred_check
          %p167 = pneg %p66
        $region14: #{tpu_custom_call.1} parent=11 // pred_check_branch
          %169 = sbr.rel (%p167) target = $region16
        $region15: #{tpu_custom_call.1} parent=11 // pred_region
          %p170 = scmp.lt.s32.totalorder %s24, 0
          %s171 = scalar_select %p170, %s24, 0
          %p172 = scmp.lt.s32.totalorder %s26, 0
          %s173 = scalar_select %p172, %s26, 0
          %s174 = sadd.s32 %s173, %s171
          %s175 = smul.addr %s174, 4
          %s176 = scalar_lea.vmem %s0, %s175
        $region16: #{tpu_custom_call.1} parent=11 // pred_fallthru
          _
        // Predicated region
        $region17: #{tpu_custom_call.1} parent=11 // pred_check
          %p177 = pneg %p92
        $region18: #{tpu_custom_call.1} parent=11 // pred_check_branch
          %179 = sbr.rel (%p177) target = $region20
        $region19: #{tpu_custom_call.1} parent=11 // pred_region
          %p180 = scmp.lt.s32.totalorder %s24, 0
          %s181 = scalar_select %p180, %s24, 0
          %s182 = smul.addr %s181, 8
          %s183 = scalar_lea.vmem %s1, %s182
        $region20: #{tpu_custom_call.1} parent=11 // pred_fallthru
          _
      $region12: #{tpu_custom_call.1} parent=5 // pred_fallthru
        _
      %p184 = scmp.lt.s32.totalorder %s12, 2
      // Predicated region
      $region21: #{tpu_custom_call.1} parent=5 // pred_check
        %p185 = pneg %p184
      $region22: #{tpu_custom_call.1} parent=5 // pred_check_branch
        %187 = sbr.rel (%p185) target = $region24
      $region23: #{tpu_custom_call.1} parent=5 // pred_region
        // Predicated region
        $region25: #{tpu_custom_call.1} parent=23 // pred_check
          %p188 = pneg %p116
        $region26: #{tpu_custom_call.1} parent=23 // pred_check_branch
          %190 = sbr.rel (%p188) target = $region28
        $region27: #{tpu_custom_call.1} parent=23 // pred_region
          %s191 = smul.u32 5, %s22
          %s192 = smul.u32 2, %s21
          %p193 = scmp.lt.s32.totalorder %s19, 1
          %s194 = scalar_select %p193, %s19, 1
          %p195 = scmp.lt.s32.totalorder %s191, 4
          %s196 = scalar_select %p195, %s191, 4
          %p197 = scmp.lt.s32.totalorder %s192, 1
          %s198 = scalar_select %p197, %s192, 1
          %s199 = smul.addr %s196, 2
          %s200 = sadd.s32 %s198, %s199
          %s201 = smul.addr %s194, 10
          %s202 = sadd.s32 %s200, %s201
          %s203 = smul.addr %s202, 4
          %s204 = scalar_lea.vmem %s2, %s203
          %s205 = smul.u32 5, %s22
          %s206 = smul.u32 2, %s21
        $region28: #{tpu_custom_call.1} parent=23 // pred_fallthru
          _
      $region24: #{tpu_custom_call.1} parent=5 // pred_fallthru
        _
      %p207 = scmp.le.s32.totalorder 1, %s12
      %p208 = scmp.lt.s32.totalorder %s12, 3
      %p209 = pnand %p207, %p208
      %p210 = pneg %p209
      // Predicated region
      $region29: #{tpu_custom_call.1} parent=5 // pred_check
        _
      $region30: #{tpu_custom_call.1} parent=5 // pred_check_branch
        %212 = sbr.rel (%p209) target = $region32
      $region31: #{tpu_custom_call.1} parent=5 // pred_region
        %s213 = ssub.s32 %s12, 1
        %p214 = scmp.lt.s32.totalorder %s24, 0
        %s215 = scalar_select %p214, %s24, 0
        %p216 = scmp.lt.s32.totalorder %s26, 0
        %s217 = scalar_select %p216, %s26, 0
        %s218 = sadd.s32 %s217, %s215
        %s219 = smul.addr %s218, 4
        %s220 = scalar_lea.vmem %s0, %s219
        %p221 = pneg %p66
        %p222 = pneg %p63
        %p223 = scmp.lt.s32.totalorder %s24, 0
        %s224 = scalar_select %p223, %s24, 0
        %s225 = smul.addr %s224, 8
        %s226 = scalar_lea.vmem %s1, %s225
        %p227 = pneg %p92
        %p228 = pneg %p89
        %s229 = smul.u32 5, %s26
        %s230 = smul.u32 2, %s25
        %p231 = scmp.lt.s32.totalorder %s23, 1
        %s232 = scalar_select %p231, %s23, 1
        %p233 = scmp.lt.s32.totalorder %s229, 4
        %s234 = scalar_select %p233, %s229, 4
        %p235 = scmp.lt.s32.totalorder %s230, 1
        %s236 = scalar_select %p235, %s230, 1
        %s237 = smul.addr %s234, 2
        %s238 = sadd.s32 %s236, %s237
        %s239 = smul.addr %s232, 10
        %s240 = sadd.s32 %s238, %s239
        %s241 = smul.addr %s240, 4
        %s242 = scalar_lea.vmem %s2, %s241
        %p243 = pneg %p122
        %p244 = pneg %p119
        %p245 = pneg %p152
        %p246 = pneg %p149
        %s247 = sand.u32 %s139, 1
        %s248 = scalar_lea.sflag [#allocation4], %s247
        %s249 = sand.u32 %s139, 1
        %s250 = smul.addr %s249, 16
        %s251 = scalar_lea.vmem [#allocation3], %s250
        %p252 = scmp.lt.s32.totalorder %s24, 0
        %s253 = scalar_select %p252, %s24, 0
        %p254 = scmp.lt.s32.totalorder %s26, 0
        %s255 = scalar_select %p254, %s26, 0
        %s256 = sadd.s32 %s255, %s253
        %s257 = smul.addr %s256, 4
        %s258 = scalar_lea.vmem %s0, %s257
        %p259 = scmp.lt.s32.totalorder %s24, 0
        %s260 = scalar_select %p259, %s24, 0
        %s261 = smul.addr %s260, 8
        %s262 = scalar_lea.vmem %s1, %s261
        %s263 = smul.u32 5, %s26
        %s264 = smul.u32 2, %s25
        %p265 = scmp.lt.s32.totalorder %s23, 1
        %s266 = scalar_select %p265, %s23, 1
        %p267 = scmp.lt.s32.totalorder %s263, 4
        %s268 = scalar_select %p267, %s263, 4
        %p269 = scmp.lt.s32.totalorder %s264, 1
        %s270 = scalar_select %p269, %s264, 1
        %s271 = smul.addr %s268, 2
        %s272 = sadd.s32 %s270, %s271
        %s273 = smul.addr %s266, 10
        %s274 = sadd.s32 %s272, %s273
        %s275 = smul.addr %s274, 4
        %s276 = scalar_lea.vmem %s2, %s275
        %s277 = smul.u32 5, %s26
        %s278 = smul.u32 2, %s25
        %s279 = smul.u32 2, %s25
        %p281 = scmp.eq.s32.totalorder %s26, 0
        // Predicated region
        $region33: #{tpu_custom_call.1} parent=31 // pred_check
          %p282 = pneg %p281
        $region34: #{tpu_custom_call.1} parent=31 // pred_check_branch
          %284 = sbr.rel (%p282) target = $region36
        $region35: #{tpu_custom_call.1} parent=31 // pred_region
          %285 = vst [vmem:[#allocation2] sm:$0xff] 0.0
          %286 = vst [vmem:[#allocation2 + $0x8] sm:$0xff] 0.0
        $region36: #{tpu_custom_call.1} parent=31 // pred_fallthru
          _
        %v287 = vld [vmem:[#allocation2] sm:$0xff]
        %v288 = vld [vmem:[#allocation2 + $0x8] sm:$0xff]
        %v289 = vld [vmem:[%s258] sm:$0xf]
        %v290 = vld [vmem:[%s276] sm:$0xff]
        %v291 = vld [vmem:[%s276 + $0x8] sm:$0xff]
        %v292 = vld [vmem:[%s276 + $0x10] sm:$0xff]
        %v293 = vld [vmem:[%s276 + $0x18] sm:$0xff]
        %v294 = vld [vmem:[%s276 + $0x20] sm:$0x33]
        %v300 = vunpack.c.l.b16 %v290
        %v301 = vunpack.c.h.b16 %v290
        %v302 = vunpack.c.l.b16 %v291
        %v303 = vunpack.c.h.b16 %v291
        %v304 = vunpack.c.l.b16 %v292
        %v305 = vunpack.c.h.b16 %v292
        %v306 = vunpack.c.l.b16 %v293
        %v307 = vunpack.c.h.b16 %v293
        %v308 = vunpack.c.l.b16 %v294
        %v309 = vunpack.c.h.b16 %v294
        %v310 = vpack.c.b16 %v302, %v300
        %v311 = vpack.c.b16 %v303, %v301
        %v312 = vpack.c.b16 %v306, %v304
        %v313 = vpack.c.b16 %v307, %v305
        %v314 = vpack.c.b16 %v308, %v308
        %v315 = vpack.c.b16 %v309, %v309
        %vm320 = vcmask 293888
        %v322 = vsel %vm320, %v289, 0
        %vm324 = vcmask 1041408
        %v326 = vsel %vm324, %v314, 0
        %v329 = vsel %vm324, %v315, 0
        %331 = vmatpush.bf16.msra.mxu0 0
        %332 = vmatpush.bf16.msra.mxu0 0
        %333 = vmatpush.bf16.msra.mxu0 0
        %334 = vmatpush.bf16.msra.mxu0 0
        %335 = vmatpush.bf16.msra.mxu0 0
        %336 = vmatpush.bf16.msra.mxu0 %v326
        %337 = vmatpush.bf16.msra.mxu0 %v312
        %338 = vmatpush.bf16.msra.mxu0 %v310
        %339 = vmatmul.bf16.gmra.mxu0 %v322
        %v340 = vpop.f32.mrf.mxu0
        %v341 = vadd.f32 0.0, %v340
        %v342 = vpop.f32.mrf.mxu0
        %343 = vdwg.mxu0
        %344 = vmatpush.bf16.msra.mxu0 0
        %345 = vmatpush.bf16.msra.mxu0 0
        %346 = vmatpush.bf16.msra.mxu0 0
        %347 = vmatpush.bf16.msra.mxu0 0
        %348 = vmatpush.bf16.msra.mxu0 0
        %349 = vmatpush.bf16.msra.mxu0 %v329
        %350 = vmatpush.bf16.msra.mxu0 %v313
        %351 = vmatpush.bf16.msra.mxu0 %v311
        %352 = vmatmul.bf16.gmra.mxu0 %v322
        %v353 = vpop.f32.mrf.mxu0
        %v354 = vadd.f32 0.0, %v353
        %v355 = vpop.f32.mrf.mxu0
        %356 = vdwg.mxu0
        %v357 = vadd.f32 %v287, %v341
        %v358 = vadd.f32 %v288, %v354
        %359 = vst [vmem:[#allocation2] sm:$0xff] %v357
        %360 = vst [vmem:[#allocation2 + $0x8] sm:$0xff] %v358
        // Predicated region
        $region37: #{tpu_custom_call.1} parent=31 // pred_check
          %p361 = pneg %p281
        $region38: #{tpu_custom_call.1} parent=31 // pred_check_branch
          %363 = sbr.rel (%p361) target = $region40
        $region39: #{tpu_custom_call.1} parent=31 // pred_region
          %v364 = vld [vmem:[#allocation2] sm:$0xff]
          %v365 = vld [vmem:[#allocation2 + $0x8] sm:$0xff]
          %v366 = vld [vmem:[%s262] sm:$0xff]
          %368 = vset.pattern.permute.xlu0 0
          %369 = vperm.xlu0 %368, %v366
          %v370 = vpop.permute.xlu0 %369
          %v372 = vadd.f32 %v364, %v370
          %v373 = vadd.f32 %v365, %v370
          %374 = vst [vmem:[%s251] sm:$0xff] %v372
          %375 = vst [vmem:[%s251 + $0x8] sm:$0xff] %v373
        $region40: #{tpu_custom_call.1} parent=31 // pred_fallthru
          _
        %s376 = sand.u32 %s139, 1
        %s377 = scalar_lea.sflag [#allocation4], %s376
        %s378 = sand.u32 %s139, 1
        %s379 = smul.addr %s378, 16
        %s380 = scalar_lea.vmem [#allocation3], %s379
        // Predicated region
        $region41: #{tpu_custom_call.1} parent=31 // pred_check
          %p381 = pneg %p149
        $region42: #{tpu_custom_call.1} parent=31 // pred_check_branch
          %383 = sbr.rel (%p381) target = $region44
        $region43: #{tpu_custom_call.1} parent=31 // pred_region
          %s384 = smul.u32 2, %s25
          %386 = vsyncadd %s377, 0
          %s387 = smul.addr %s24, 2
          %s388 = sadd.s32 %s384, %s387
          %s389 = smul.addr %s23, 2
          %s390 = sadd.s32 %s388, %s389
          %s391 = smul.addr %s390, 8
          %s392 = scalar_lea.hbm %s3, %s391
          %s394 = sshll.u32 %s380, 4
          %s395 = int_to_ptr.vmem [resolvable:$true] %s394
          %s396 = sshll.u32 %s392, 4
          %s397 = int_to_ptr.hbm [resolvable:$true] %s396
          %399 = dma.vmem_to_hbm [thread:$0]  %s395, 256, %s397, %s377
        $region44: #{tpu_custom_call.1} parent=31 // pred_fallthru
          _
      $region32: #{tpu_custom_call.1} parent=5 // pred_fallthru
        _
      %p400 = scmp.le.s32.totalorder 2, %s12
      // Predicated region
      $region45: #{tpu_custom_call.1} parent=5 // pred_check
        %p401 = pneg %p400
      $region46: #{tpu_custom_call.1} parent=5 // pred_check_branch
        %403 = sbr.rel (%p401) target = $region48
      $region47: #{tpu_custom_call.1} parent=5 // pred_region
        %s404 = ssub.s32 %s12, 2
        // Predicated region
        $region49: #{tpu_custom_call.1} parent=47 // pred_check
          %p405 = pneg %p155
        $region50: #{tpu_custom_call.1} parent=47 // pred_check_branch
          %407 = sbr.rel (%p405) target = $region52
        $region51: #{tpu_custom_call.1} parent=47 // pred_region
          %s408 = sand.u32 %s140, 1
          %s409 = scalar_lea.sflag [#allocation4], %s408
          %s410 = sand.u32 %s140, 1
          %s411 = smul.addr %s410, 16
          %s412 = scalar_lea.vmem [#allocation3], %s411
          %414 = dma.done %s409, 256
        $region52: #{tpu_custom_call.1} parent=47 // pred_fallthru
          _
      $region48: #{tpu_custom_call.1} parent=5 // pred_fallthru
        _
    $region6: #{tpu_custom_call.1} parent=1 // loop_footer
      %s16 = sadd.s32 1, %s12
    $region7: #{tpu_custom_call.1} parent=1 // loop_footer_branch
      %11 = sbr.rel target = $region3
    $region8: #{tpu_custom_call.1} parent=1 // loop_exit
      _
    %415 = vsyncpa [#allocation4], 1
    %s416 = scalar_lea.sflag [#allocation4], 1
    %417 = vsyncpa %s416, 1

</llo_original>
